<compile_context>
chip_gen: v6e
topology: v6e:2x2x1
jax: 0.10.0
libtpu: 0.0.40
codegen_flags: <defaults>
</compile_context>

<pallas_src>
import jax
import jax.numpy as jnp
from jax.experimental import pallas as pl
from jax.experimental.pallas import tpu as pltpu

C_IN, C_OUT, KH, KW = 1, 2, 2, 2
H, W = 4, 4
HO, WO = H - KH + 1, W - KW + 1   # 3, 3
PH, PW = 8, 128                   # one (sublane, lane) aligned f32 tile

# Fixed ConvTestModel parameters, baked in as compile-time immediates.
WEIGHT = (((0.1, -2.0), (1.0, 0.1)),   # out channel 0, in channel 0
          ((0.1, 2.0), (-1.0, 0.1)))   # out channel 1, in channel 0
BIAS = (0.1, 1.0)

# Correctness guard: the roll-based taps wrap original row 0 / col 0 into
# row PH-1 / col PW-1; those wrapped positions must lie outside the tap-read
# window (rows < H, cols < W), otherwise this scheme silently breaks.
assert KH == 2 and KW == 2
assert H < PH and W < PW


def conv_kernel(x_ref, o_ref, buf):
    """x_ref: (1, 1, 4, 4) f32 VMEM  -- raw NCHW input, full-array spec.
    o_ref: (1, 2, 3, 3) f32 VMEM  -- final NCHW output, full-array spec.
    buf:   (8, 128) f32 VMEM scratch -- zero-extended working tile."""
    # Zero-extend the 4x4 image onto one aligned (8, 128) tile in-kernel
    # (no padded HBM intermediate, no extra pad/slice device launches).
    buf[...] = jnp.zeros((PH, PW), jnp.float32)
    buf[0:H, 0:W] = x_ref[0, 0]
    x = buf[...]

    # taps[t][i, j] == x[i + ki, j + kj] over the valid output window; rolls
    # run on the XLU slot and are shared by both output channels.  Wrap-around
    # only touches row PH-1 / col PW-1, outside the rows/cols read below.
    x01 = pltpu.roll(x, shift=PW - 1, axis=1)     # x[i, j + 1]
    x10 = pltpu.roll(x, shift=PH - 1, axis=0)     # x[i + 1, j]
    x11 = pltpu.roll(x10, shift=PW - 1, axis=1)   # x[i + 1, j + 1]
    taps = (x, x01, x10, x11)

    for oc in range(C_OUT):
        (w00, w01), (w10, w11) = WEIGHT[oc]
        acc = (w00 * taps[0] + w01 * taps[1]
               + w10 * taps[2] + w11 * taps[3]) + BIAS[oc]
        # Direct per-channel store of the valid 3x3 window straight into the
        # final NCHW layout (no jnp.stack, no wrapper slice/reshape).
        o_ref[0, oc] = acc[:HO, :WO]


def conv_test_model_forward(x_nchw):
    """x_nchw: (1, 1, 4, 4) f32 -> (1, 2, 3, 3) f32, matching
    torch.nn.Conv2d(1, 2, kernel_size=2) with ConvTestModel's weights."""
    return pl.pallas_call(
        conv_kernel,
        out_shape=jax.ShapeDtypeStruct((1, C_OUT, HO, WO), jnp.float32),
        in_specs=[pl.BlockSpec(memory_space=pltpu.MemorySpace.VMEM)],
        out_specs=pl.BlockSpec(memory_space=pltpu.MemorySpace.VMEM),
        scratch_shapes=[pltpu.VMEM((PH, PW), jnp.float32)],
    )(x_nchw.astype(jnp.float32))


if __name__ == "__main__":
    # Deterministic input at the module's INPUT_SIZE = [1, 1, 4, 4]
    key = jax.random.PRNGKey(0)
    x = jax.random.normal(key, (1, C_IN, H, W), dtype=jnp.float32)

    out = conv_test_model_forward(x)
    out = jax.block_until_ready(out)

    # Reference check against XLA's conv (same semantics as torch.nn.Conv2d).
    weight = jnp.asarray(WEIGHT, dtype=jnp.float32).reshape(C_OUT, C_IN, KH, KW)
    bias = jnp.asarray(BIAS, dtype=jnp.float32)
    ref = jax.lax.conv_general_dilated(
        x, weight, window_strides=(1, 1), padding="VALID",
        dimension_numbers=("NCHW", "OIHW", "NCHW")) + bias.reshape(1, C_OUT, 1, 1)

    assert out.shape == (1, C_OUT, HO, WO)
    assert jnp.allclose(out, ref, atol=1e-5, rtol=1e-5), (out, ref)

    print("KERNEL_OK")
</pallas_src>

<mosaic_0001>
module attributes {stable_mosaic.version = 11 : i64} {
  func.func @conv_kernel(%arg0: memref<1x1x4x4xf32, #tpu.memory_space<vmem>>, %arg1: memref<1x2x3x3xf32, #tpu.memory_space<vmem>>, %arg2: memref<8x128xf32, #tpu.memory_space<vmem>>) attributes {dimension_semantics = [], scalar_prefetch = 0 : i64, scratch_operands = 1 : i64, tpu.core_type = #tpu.core_type<tc>} {
    %cst = arith.constant 0.000000e+00 : f32
    %0 = vector.broadcast %cst : f32 to vector<8x128xf32>
    %c0 = arith.constant 0 : index
    %c0_0 = arith.constant 0 : index
    %1 = vector.load %arg2[%c0, %c0_0] : memref<8x128xf32, #tpu.memory_space<vmem>>, vector<8x128xf32>
    tpu.vector_store %arg2[%c0, %c0_0], %0 {strides = array<i32>} : memref<8x128xf32, #tpu.memory_space<vmem>>, vector<8x128xf32>,
    %c0_1 = arith.constant 0 : index
    %c0_2 = arith.constant 0 : index
    %c0_3 = arith.constant 0 : index
    %c0_4 = arith.constant 0 : index
    %2 = vector.load %arg0[%c0_1, %c0_2, %c0_3, %c0_4] : memref<1x1x4x4xf32, #tpu.memory_space<vmem>>, vector<1x1x4x4xf32>
    %3 = vector.shape_cast %2 : vector<1x1x4x4xf32> to vector<4x4xf32>
    %c0_5 = arith.constant 0 : index
    %c0_6 = arith.constant 0 : index
    %4 = vector.load %arg2[%c0_5, %c0_6] : memref<8x128xf32, #tpu.memory_space<vmem>>, vector<4x4xf32>
    tpu.vector_store %arg2[%c0_5, %c0_6], %3 {strides = array<i32>} : memref<8x128xf32, #tpu.memory_space<vmem>>, vector<4x4xf32>,
    %c0_7 = arith.constant 0 : index
    %c0_8 = arith.constant 0 : index
    %5 = vector.load %arg2[%c0_7, %c0_8] : memref<8x128xf32, #tpu.memory_space<vmem>>, vector<8x128xf32>
    %c127_i32 = arith.constant 127 : i32
    %6 = tpu.dynamic_rotate %5 by %c127_i32 dim 1 : vector<8x128xf32>, i32 -> vector<8x128xf32>
    %c7_i32 = arith.constant 7 : i32
    %7 = tpu.dynamic_rotate %5 by %c7_i32 dim 0 : vector<8x128xf32>, i32 -> vector<8x128xf32>
    %c127_i32_9 = arith.constant 127 : i32
    %8 = tpu.dynamic_rotate %7 by %c127_i32_9 dim 1 : vector<8x128xf32>, i32 -> vector<8x128xf32>
    %cst_10 = arith.constant 1.000000e-01 : f32
    %9 = vector.broadcast %cst_10 : f32 to vector<8x128xf32>
    %10 = arith.mulf %9, %5 : vector<8x128xf32>
    %cst_11 = arith.constant -2.000000e+00 : f32
    %11 = vector.broadcast %cst_11 : f32 to vector<8x128xf32>
    %12 = arith.mulf %11, %6 : vector<8x128xf32>
    %13 = arith.addf %10, %12 : vector<8x128xf32>
    %cst_12 = arith.constant 1.000000e+00 : f32
    %14 = vector.broadcast %cst_12 : f32 to vector<8x128xf32>
    %15 = arith.mulf %14, %7 : vector<8x128xf32>
    %16 = arith.addf %13, %15 : vector<8x128xf32>
    %cst_13 = arith.constant 1.000000e-01 : f32
    %17 = vector.broadcast %cst_13 : f32 to vector<8x128xf32>
    %18 = arith.mulf %17, %8 : vector<8x128xf32>
    %19 = arith.addf %16, %18 : vector<8x128xf32>
    %cst_14 = arith.constant 1.000000e-01 : f32
    %20 = vector.broadcast %cst_14 : f32 to vector<8x128xf32>
    %21 = arith.addf %19, %20 : vector<8x128xf32>
    %22 = vector.extract_strided_slice %21 {offsets = [0, 0], sizes = [3, 3], strides = [1, 1]} : vector<8x128xf32> to vector<3x3xf32>
    %c0_15 = arith.constant 0 : index
    %c0_16 = arith.constant 0 : index
    %c0_17 = arith.constant 0 : index
    %c0_18 = arith.constant 0 : index
    %23 = vector.load %arg1[%c0_15, %c0_16, %c0_17, %c0_18] : memref<1x2x3x3xf32, #tpu.memory_space<vmem>>, vector<1x1x3x3xf32>
    %24 = vector.shape_cast %23 : vector<1x1x3x3xf32> to vector<3x3xf32>
    %25 = vector.shape_cast %22 : vector<3x3xf32> to vector<1x1x3x3xf32>
    tpu.vector_store %arg1[%c0_15, %c0_16, %c0_17, %c0_18], %25 {strides = array<i32>} : memref<1x2x3x3xf32, #tpu.memory_space<vmem>>, vector<1x1x3x3xf32>,
    %cst_19 = arith.constant 1.000000e-01 : f32
    %26 = vector.broadcast %cst_19 : f32 to vector<8x128xf32>
    %27 = arith.mulf %26, %5 : vector<8x128xf32>
    %cst_20 = arith.constant 2.000000e+00 : f32
    %28 = vector.broadcast %cst_20 : f32 to vector<8x128xf32>
    %29 = arith.mulf %28, %6 : vector<8x128xf32>
    %30 = arith.addf %27, %29 : vector<8x128xf32>
    %cst_21 = arith.constant -1.000000e+00 : f32
    %31 = vector.broadcast %cst_21 : f32 to vector<8x128xf32>
    %32 = arith.mulf %31, %7 : vector<8x128xf32>
    %33 = arith.addf %30, %32 : vector<8x128xf32>
    %cst_22 = arith.constant 1.000000e-01 : f32
    %34 = vector.broadcast %cst_22 : f32 to vector<8x128xf32>
    %35 = arith.mulf %34, %8 : vector<8x128xf32>
    %36 = arith.addf %33, %35 : vector<8x128xf32>
    %cst_23 = arith.constant 1.000000e+00 : f32
    %37 = vector.broadcast %cst_23 : f32 to vector<8x128xf32>
    %38 = arith.addf %36, %37 : vector<8x128xf32>
    %39 = vector.extract_strided_slice %38 {offsets = [0, 0], sizes = [3, 3], strides = [1, 1]} : vector<8x128xf32> to vector<3x3xf32>
    %c0_24 = arith.constant 0 : index
    %c1 = arith.constant 1 : index
    %c0_25 = arith.constant 0 : index
    %c0_26 = arith.constant 0 : index
    %40 = vector.load %arg1[%c0_24, %c1, %c0_25, %c0_26] : memref<1x2x3x3xf32, #tpu.memory_space<vmem>>, vector<1x1x3x3xf32>
    %41 = vector.shape_cast %40 : vector<1x1x3x3xf32> to vector<3x3xf32>
    %42 = vector.shape_cast %39 : vector<3x3xf32> to vector<1x1x3x3xf32>
    tpu.vector_store %arg1[%c0_24, %c1, %c0_25, %c0_26], %42 {strides = array<i32>} : memref<1x2x3x3xf32, #tpu.memory_space<vmem>>, vector<1x1x3x3xf32>,
    return
  }
}

</mosaic_0001>

<llo_original>
// kernel: tpu_custom_call.1
$region0: #{tpu_custom_call.1}
  #allocation0 [shape = 'u32[]', space=smem, size = 0x4, offset = 0x4, fixed_abs, tag = 'smem constant byte address 0x4 - core index']
  #allocation1 [shape = 'u32[144,128]{1,0:T(1,128)}', space=vmem, size = 0x12000, scoped, tag = 'internal scratch']
  #allocation2 [shape = 'f32[8,128]{1,0:T(8,128)}', space=vmem, size = 0x1000, scoped, tag = 'scratch operand']
  %s0 = inlined_call_operand.hbm [shape: f32[1,1,4,4], index: 0, kind: input, shape index: {}]
  %s1 = inlined_call_operand.vmem [shape: f32[1,2,3,3], index: 1, kind: output, shape index: {}]
  %s2 = sld [smem:[#allocation0]]
  $region18: #{tpu_custom_call.1} parent=0
    _
  %s4 = ssub.s32 1, %s2
  %s5 = scalar_select 0, %s4, %s2
  $region1: #{tpu_custom_call.1} parent=0
    #allocation3 [shape = 'u8[2048]{0}', space=vmem, size = 0x800, scoped, tag = 'input window, operand 0, single buffered']
    #allocation4 [shape = 's32[1]{0}', space=sflag, size = 0x4, scoped, tag = 'scoped memory for tpu_custom_call.1']
    %6 = vsyncpa [#allocation4], 0
    // Predicated region
    $region2: #{tpu_custom_call.1} parent=1 // pred_check
      _
    $region3: #{tpu_custom_call.1} parent=1 // pred_check_branch
      %8 = sbr.rel (0) target = $region5
    $region4: #{tpu_custom_call.1} parent=1 // pred_region
      %s10 = ssub.s32 64, 64
      %11 = vsyncadd [#allocation4], %s10
      %s13 = sshll.u32 [#allocation3], 4
      %s14 = int_to_ptr.vmem [resolvable:$true] %s13
      %16 = dma.hbm_to_vmem [thread:$0]  %s0, 64, %s14, [#allocation4]
    $region5: #{tpu_custom_call.1} parent=1 // pred_fallthru
      _
    // Predicated region
    $region6: #{tpu_custom_call.1} parent=1 // pred_check
      _
    $region7: #{tpu_custom_call.1} parent=1 // pred_check_branch
      %18 = sbr.rel (0) target = $region9
    $region8: #{tpu_custom_call.1} parent=1 // pred_region
      %19 = dma.done [#allocation4], 64
    $region9: #{tpu_custom_call.1} parent=1 // pred_fallthru
      _
    %20 = vst [vmem:[#allocation2] sm:$0xff] 0.0
    %v21 = vld [vmem:[#allocation3] sm:$0xf]
    %vm22 = vcmask 27648
    %23 = vst.msk [vmem:[#allocation2] sm:$0xf] %vm22, %v21
    %v24 = vld [vmem:[#allocation2] sm:$0xff]
    %25 = vrot.lane.b32.xlu0 %v24, 127
    %v26 = vpop.permute.xlu0 %25
    %v27 = vrot.slane %v24, 1
    %28 = vrot.lane.b32.xlu0 %v27, 127
    %v29 = vpop.permute.xlu0 %28
    %v30 = vmul.f32 %v24, 0.1
    %v31 = vmul.f32 %v26, -2.0
    %v32 = vadd.f32 %v30, %v31
    %v33 = vadd.f32 %v32, %v27
    %v34 = vmul.f32 %v29, 0.1
    %v35 = vadd.f32 %v33, %v34
    %v36 = vadd.f32 %v35, 0.1
    %vm37 = vcmask 18432
    %38 = vst.msk [vmem:[%s1] sm:$0x7] %vm37, %v36
    %v39 = vmul.f32 %v26, 2.0
    %v40 = vadd.f32 %v30, %v39
    %v41 = vmul.f32 %v27, -1.0
    %v42 = vadd.f32 %v40, %v41
    %v43 = vadd.f32 %v42, %v34
    %v44 = vadd.f32 %v43, 1.0
    %s45 = scalar_lea.vmem %s1, 4
    %46 = vst.msk [vmem:[%s45] sm:$0x7] %vm37, %v44
    // Predicated region
    $region10: #{tpu_custom_call.1} parent=1 // pred_check
      _
    $region11: #{tpu_custom_call.1} parent=1 // pred_check_branch
      %48 = sbr.rel (0) target = $region13
    $region12: #{tpu_custom_call.1} parent=1 // pred_region
      _
    $region13: #{tpu_custom_call.1} parent=1 // pred_fallthru
      _
    // Predicated region
    $region14: #{tpu_custom_call.1} parent=1 // pred_check
      _
    $region15: #{tpu_custom_call.1} parent=1 // pred_check_branch
      %50 = sbr.rel (0) target = $region17
    $region16: #{tpu_custom_call.1} parent=1 // pred_region
      _
    $region17: #{tpu_custom_call.1} parent=1 // pred_fallthru
      _
    %51 = vsyncpa [#allocation4], 1

</llo_original>
